<compile_context>
chip_gen: v6e
topology: v6e:2x2x1
jax: 0.10.0
libtpu: 0.0.40
codegen_flags: <defaults>
</compile_context>

<pallas_src>
import functools

import jax
import jax.numpy as jnp
from jax import lax
from jax.experimental import pallas as pl
from jax.experimental.pallas import tpu as pltpu

R1 = 0.001
R2 = 0.001
EPS = 1e-9

_NUM_CORE_SPLIT = 2            # leading "parallel" grid axis (v7x megacore);
                               # negligible cost on single-TC v5e/v6e.
_MAX_TM = 2048                 # batch-tile cap (keeps per-step latency sane)
_INPUT_TILE_BUDGET = 24 * 1024 * 1024   # double-buffered input-tile budget

_DN_TT = (((0,), (0,)), ((), ()))    # contract leading axes: A^T @ B
_DN_ROW = (((1,), (0,)), ((), ()))   # (1, tm) @ (tm, o)


def _round_up(x, k):
    return (x + k - 1) // k * k


def _vmem_limit_bytes():
    """Generation-aware scoped-VMEM limit (~96 MiB on v5e/v6e, ~48 MiB v7x)."""
    try:
        cap = int(pltpu.get_tpu_info().vmem_capacity_bytes)
    except Exception:
        cap = 64 * 1024 * 1024          # conservative: v7x per-core VMEM
    return max(32 * 1024 * 1024, min(int(0.75 * cap), cap - 8 * 1024 * 1024))


# ---------------------------------------------------------------------------
# Covariance stage: batch-tiled reduction, per-core partial Grams + col sums.
# ---------------------------------------------------------------------------
def _cov_kernel(h1_ref, h2_ref, c1_ref, c2_ref,
                g11_ref, g12_ref, g22_ref, s1_ref, s2_ref,
                *, m, tm, tiles_per_core):
    core = pl.program_id(0)     # "parallel" axis (megacore split of the batch)
    step = pl.program_id(1)     # "arbitrary" reduction axis over batch tiles

    @pl.when(step == 0)
    def _():
        g11_ref[...] = jnp.zeros_like(g11_ref)
        g12_ref[...] = jnp.zeros_like(g12_ref)
        g22_ref[...] = jnp.zeros_like(g22_ref)
        s1_ref[...] = jnp.zeros_like(s1_ref)
        s2_ref[...] = jnp.zeros_like(s2_ref)

    # Logical (unclamped) tile index. The DMA index_map clamps to the last
    # real tile, so ragged rows of the last tile and whole phantom tiles are
    # zeroed here; the true m is used for centering in the wrapper.
    tile = core * tiles_per_core + step
    rows_valid = m - tile * tm
    row_ids = lax.broadcasted_iota(jnp.int32, (tm, 1), 0)
    mask = row_ids < rows_valid

    # Shifted accumulation (shift = first sample of each view) to limit
    # cancellation in the single-pass  G - s^T s / m  centering correction.
    # Covariance is shift-invariant, so the wrapper math is unchanged.
    h1s = h1_ref[...] - c1_ref[...]
    h2s = h2_ref[...] - c2_ref[...]
    h1m = jnp.where(mask, h1s, jnp.zeros_like(h1s))
    h2m = jnp.where(mask, h2s, jnp.zeros_like(h2s))

    # Three Gram blocks straight off the (native-dtype) input tiles; f32 MXU
    # accumulation directly into the resident output refs.
    g11_ref[...] += lax.dot_general(h1m, h1m, _DN_TT,
                                    preferred_element_type=jnp.float32)
    g12_ref[...] += lax.dot_general(h1m, h2m, _DN_TT,
                                    preferred_element_type=jnp.float32)
    g22_ref[...] += lax.dot_general(h2m, h2m, _DN_TT,
                                    preferred_element_type=jnp.float32)

    # Column sums via a tiny MXU ones-dot (keeps VPU/XLU free; no per-step
    # f32 cast of sub-32-bit inputs on v5e).
    ones_row = jnp.ones((1, tm), h1m.dtype)
    s1_ref[...] += lax.dot_general(ones_row, h1m, _DN_ROW,
                                   preferred_element_type=jnp.float32)
    s2_ref[...] += lax.dot_general(ones_row, h2m, _DN_ROW,
                                   preferred_element_type=jnp.float32)


def _covariances(h1, h2, max_tile_m=None):
    """SigmaHat11 + r1*I, SigmaHat12, SigmaHat22 + r2*I  as (o, o) float32."""
    m, o = h1.shape
    assert h2.shape == (m, o)
    assert h1.dtype == h2.dtype
    itemsize = jnp.dtype(h1.dtype).itemsize

    # Sublane granularity of the batch tile: 8 (f32) / 16 (bf16) / 32 (int8).
    sub = max(8, 32 // itemsize)

    vmem_limit = _vmem_limit_bytes()
    acc_bytes = (3 * o * o + 2 * o) * 4          # resident f32 output blocks
    # TODO(synk): very large o would need a feature-tiled (2-D) output grid;
    # for CCA projection dims the (o,o) accumulators comfortably fit VMEM.
    input_budget = max(2 * 1024 * 1024,
                       min(_INPUT_TILE_BUDGET,
                           vmem_limit - acc_bytes - 4 * 1024 * 1024))
    tm_cap = input_budget // (2 * 2 * o * itemsize)   # 2 inputs, double-buffered
    tm = min(_round_up(m, sub), _MAX_TM, max(sub, tm_cap // sub * sub))
    if max_tile_m is not None:                         # test / tuning override
        tm = max(sub, min(tm, _round_up(max_tile_m, sub)))

    n_tiles = pl.cdiv(m, tm)
    nc = _NUM_CORE_SPLIT
    tiles_per_core = pl.cdiv(n_tiles, nc)

    def tile_map(c, i):
        # Clamp so phantom steps never index past the last real block; their
        # contribution is masked to zero inside the kernel.
        return (jnp.minimum(c * tiles_per_core + i, n_tiles - 1), 0)

    def slab_map(c, i):
        return (c, 0, 0)

    cost = pl.CostEstimate(
        flops=2 * m * o * (3 * o + 2),
        transcendentals=0,
        bytes_accessed=2 * m * o * itemsize + 2 * o * itemsize + nc * acc_bytes,
    )

    shift1 = lax.slice(h1, (0, 0), (1, o))
    shift2 = lax.slice(h2, (0, 0), (1, o))

    g11p, g12p, g22p, s1p, s2p = pl.pallas_call(
        functools.partial(_cov_kernel, m=m, tm=tm,
                          tiles_per_core=tiles_per_core),
        out_shape=(
            jax.ShapeDtypeStruct((nc, o, o), jnp.float32),
            jax.ShapeDtypeStruct((nc, o, o), jnp.float32),
            jax.ShapeDtypeStruct((nc, o, o), jnp.float32),
            jax.ShapeDtypeStruct((nc, 1, o), jnp.float32),
            jax.ShapeDtypeStruct((nc, 1, o), jnp.float32),
        ),
        grid_spec=pltpu.PrefetchScalarGridSpec(
            num_scalar_prefetch=0,
            grid=(nc, tiles_per_core),
            in_specs=[
                pl.BlockSpec((tm, o), tile_map),
                pl.BlockSpec((tm, o), tile_map),
                pl.BlockSpec((1, o), lambda c, i: (0, 0)),
                pl.BlockSpec((1, o), lambda c, i: (0, 0)),
            ],
            out_specs=[
                pl.BlockSpec((None, o, o), slab_map),
                pl.BlockSpec((None, o, o), slab_map),
                pl.BlockSpec((None, o, o), slab_map),
                pl.BlockSpec((None, 1, o), slab_map),
                pl.BlockSpec((None, 1, o), slab_map),
            ],
        ),
        compiler_params=pltpu.CompilerParams(
            dimension_semantics=("parallel", "arbitrary"),
            vmem_limit_bytes=vmem_limit,
        ),
        cost_estimate=cost,
    )(h1, h2, shift1, shift2)

    # Tiny XLA epilogue: combine the per-core partials, apply the rank-1
    # centering correction (Hbar^T Hbar = G - s^T s / m) and regularization.
    g11 = jnp.sum(g11p, axis=0)
    g12 = jnp.sum(g12p, axis=0)
    g22 = jnp.sum(g22p, axis=0)
    s1 = jnp.sum(s1p, axis=0)            # (1, o)
    s2 = jnp.sum(s2p, axis=0)

    inv_m = 1.0 / m
    inv_m1 = 1.0 / (m - 1)
    eye = jnp.eye(o, dtype=jnp.float32)
    sig12 = (g12 - (s1.T @ s2) * inv_m) * inv_m1
    sig11 = (g11 - (s1.T @ s1) * inv_m) * inv_m1 + R1 * eye
    sig22 = (g22 - (s2.T @ s2) * inv_m) * inv_m1 + R2 * eye
    return sig11, sig12, sig22


def cca_loss(h1, h2, outdim_size, use_all_singular_values=False, *,
             max_tile_m=None):
    m, o = h1.shape
    assert h2.shape == (m, o)

    sig11, sig12, sig22 = _covariances(h1, h2, max_tile_m=max_tile_m)

    # TODO(synk): symmetric eigendecomposition (torch.symeig) has no Pallas
    # equivalent; it stays in XLA (jnp.linalg.eigh) on the exact (o, o) sizes.
    d1, v1 = jnp.linalg.eigh(sig11)
    d2, v2 = jnp.linalg.eigh(sig22)

    # posInd selection == zero weight for eigenvalues <= eps in V diag(w) V^T.
    w1 = jnp.where(d1 > EPS, lax.rsqrt(jnp.maximum(d1, EPS)), 0.0)
    w2 = jnp.where(d2 > EPS, lax.rsqrt(jnp.maximum(d2, EPS)), 0.0)

    # TODO(synk): the (o,o) RootInv/Tval chain stays in XLA (a handful of small
    # matmuls that fuse with the eigh epilogue); a fused Pallas Tval kernel
    # only pays off for very large o (perf-review item #10).
    if use_all_singular_values:
        ri1 = (v1 * w1) @ v1.T
        ri2 = (v2 * w2) @ v2.T
        tval = ri1 @ sig12 @ ri2
        # trace(elementwise_sqrt(Tval^T Tval)) == sum(sqrt(diag(Tval^T Tval))).
        corr = jnp.sum(jnp.sqrt(jnp.sum(tval * tval, axis=0)))
    else:
        # M = diag(w1) V1^T S12 V2 diag(w2);  M^T M is similar to Tval^T Tval
        # via the orthogonal V2, so it has identical eigenvalues (3 matmuls
        # instead of 5).
        m_mat = (v1 * w1).T @ sig12 @ (v2 * w2)
        tt = m_mat.T @ m_mat + R1 * jnp.eye(o, dtype=jnp.float32)
        u = jnp.linalg.eigh(tt)[0]
        u = jnp.where(u > EPS, u, EPS)
        u_top = lax.top_k(u, outdim_size)[0]
        corr = jnp.sum(jnp.sqrt(u_top))
    return -corr


# ---------------------------------------------------------------------------
# Pure-JAX mirror of the PyTorch reference (no Pallas) for numerical checking.
# ---------------------------------------------------------------------------
def _cca_loss_reference(h1, h2, outdim_size, use_all_singular_values):
    m, o = h1.shape
    h1 = h1.astype(jnp.float32)
    h2 = h2.astype(jnp.float32)
    h1c = h1 - h1.mean(axis=0, keepdims=True)
    h2c = h2 - h2.mean(axis=0, keepdims=True)
    s12 = (h1c.T @ h2c) / (m - 1)
    s11 = (h1c.T @ h1c) / (m - 1) + R1 * jnp.eye(o, dtype=jnp.float32)
    s22 = (h2c.T @ h2c) / (m - 1) + R2 * jnp.eye(o, dtype=jnp.float32)
    d1, v1 = jnp.linalg.eigh(s11)
    d2, v2 = jnp.linalg.eigh(s22)
    w1 = jnp.where(d1 > EPS, jnp.maximum(d1, EPS) ** -0.5, 0.0)
    w2 = jnp.where(d2 > EPS, jnp.maximum(d2, EPS) ** -0.5, 0.0)
    ri1 = (v1 * w1) @ v1.T
    ri2 = (v2 * w2) @ v2.T
    tval = ri1 @ s12 @ ri2
    tt = tval.T @ tval
    if use_all_singular_values:
        return -jnp.sum(jnp.sqrt(jnp.diagonal(tt)))
    tt = tt + R1 * jnp.eye(o, dtype=jnp.float32)
    u = jnp.linalg.eigh(tt)[0]
    u = jnp.where(u > EPS, u, EPS)
    return -jnp.sum(jnp.sqrt(lax.top_k(u, outdim_size)[0]))


if __name__ == "__main__":
    key = jax.random.PRNGKey(0)
    k1, k2, k3, k4 = jax.random.split(key, 4)

    # Test 1: small aligned shapes, both loss branches.
    m, o = 16, 8
    outdim_size = 4
    H1 = jax.random.normal(k1, (m, o), dtype=jnp.float32)
    H2 = jax.random.normal(k2, (m, o), dtype=jnp.float32)

    loss = jax.block_until_ready(
        cca_loss(H1, H2, outdim_size, use_all_singular_values=False))
    loss_all = jax.block_until_ready(
        cca_loss(H1, H2, outdim_size, use_all_singular_values=True))
    assert jnp.isfinite(loss), f"non-finite loss: {loss}"
    assert jnp.isfinite(loss_all), f"non-finite loss (all sv): {loss_all}"

    ref = float(_cca_loss_reference(H1, H2, outdim_size, False))
    ref_all = float(_cca_loss_reference(H1, H2, outdim_size, True))
    assert abs(float(loss) - ref) < 5e-3 * max(1.0, abs(ref)), (loss, ref)
    assert abs(float(loss_all) - ref_all) < 5e-3 * max(1.0, abs(ref_all)), (
        loss_all, ref_all)

    # Test 2: ragged batch (m not a multiple of the tile) with a forced small
    # tile so multi-step accumulation, the ragged-row mask, the phantom step
    # and the clamped index_map are all exercised.
    m2, o2, out2 = 21, 12, 5
    H1b = jax.random.normal(k3, (m2, o2), dtype=jnp.float32)
    H2b = jax.random.normal(k4, (m2, o2), dtype=jnp.float32)
    loss_r = jax.block_until_ready(
        cca_loss(H1b, H2b, out2, use_all_singular_values=False, max_tile_m=8))
    ref_r = float(_cca_loss_reference(H1b, H2b, out2, False))
    assert jnp.isfinite(loss_r), f"non-finite ragged loss: {loss_r}"
    assert abs(float(loss_r) - ref_r) < 5e-3 * max(1.0, abs(ref_r)), (
        loss_r, ref_r)

    print("KERNEL_OK")
</pallas_src>

<mosaic_0001>
module attributes {stable_mosaic.version = 11 : i64} {
  func.func @_cov_kernel(%arg0: i32, %arg1: i32, %arg2: memref<16x8xf32, #tpu.memory_space<vmem>>, %arg3: memref<16x8xf32, #tpu.memory_space<vmem>>, %arg4: memref<1x8xf32, #tpu.memory_space<vmem>>, %arg5: memref<1x8xf32, #tpu.memory_space<vmem>>, %arg6: memref<1x8x8xf32, #tpu.memory_space<vmem>>, %arg7: memref<1x8x8xf32, #tpu.memory_space<vmem>>, %arg8: memref<1x8x8xf32, #tpu.memory_space<vmem>>, %arg9: memref<1x1x8xf32, #tpu.memory_space<vmem>>, %arg10: memref<1x1x8xf32, #tpu.memory_space<vmem>>) attributes {dimension_semantics = [#tpu.dimension_semantics<parallel>, #tpu.dimension_semantics<arbitrary>], iteration_bounds = array<i64: 2, 1>, scalar_prefetch = 0 : i64, scratch_operands = 0 : i64, tpu.core_type = #tpu.core_type<tc>, window_params = [{transform_indices = @transform_0, window_bounds = array<i64: 16, 8>}, {transform_indices = @transform_1, window_bounds = array<i64: 16, 8>}, {pipeline_mode = #tpu.pipeline_mode<synchronous>, transform_indices = @transform_2, window_bounds = array<i64: 1, 8>}, {pipeline_mode = #tpu.pipeline_mode<synchronous>, transform_indices = @transform_3, window_bounds = array<i64: 1, 8>}, {transform_indices = @transform_4, window_bounds = array<i64: 1, 8, 8>}, {transform_indices = @transform_5, window_bounds = array<i64: 1, 8, 8>}, {transform_indices = @transform_6, window_bounds = array<i64: 1, 8, 8>}, {transform_indices = @transform_7, window_bounds = array<i64: 1, 1, 8>}, {transform_indices = @transform_8, window_bounds = array<i64: 1, 1, 8>}]} {
    %c0_i32 = arith.constant 0 : i32
    %0 = arith.cmpi eq, %arg1, %c0_i32 : i32
    %1 = arith.extui %0 : i1 to i32
    %c0_i32_0 = arith.constant 0 : i32
    %2 = arith.cmpi ne, %1, %c0_i32_0 : i32
    scf.if %2 {
      %cst_46 = arith.constant 0.000000e+00 : f32
      %62 = vector.broadcast %cst_46 : f32 to vector<8x8xf32>
      %c0_47 = arith.constant 0 : index
      %c0_48 = arith.constant 0 : index
      %c0_49 = arith.constant 0 : index
      %63 = vector.load %arg6[%c0_47, %c0_48, %c0_49] : memref<1x8x8xf32, #tpu.memory_space<vmem>>, vector<1x8x8xf32>
      %64 = vector.shape_cast %63 : vector<1x8x8xf32> to vector<8x8xf32>
      %65 = vector.shape_cast %62 : vector<8x8xf32> to vector<1x8x8xf32>
      tpu.vector_store %arg6[%c0_47, %c0_48, %c0_49], %65 {strides = array<i32>} : memref<1x8x8xf32, #tpu.memory_space<vmem>>, vector<1x8x8xf32>,
      %cst_50 = arith.constant 0.000000e+00 : f32
      %66 = vector.broadcast %cst_50 : f32 to vector<8x8xf32>
      %c0_51 = arith.constant 0 : index
      %c0_52 = arith.constant 0 : index
      %c0_53 = arith.constant 0 : index
      %67 = vector.load %arg7[%c0_51, %c0_52, %c0_53] : memref<1x8x8xf32, #tpu.memory_space<vmem>>, vector<1x8x8xf32>
      %68 = vector.shape_cast %67 : vector<1x8x8xf32> to vector<8x8xf32>
      %69 = vector.shape_cast %66 : vector<8x8xf32> to vector<1x8x8xf32>
      tpu.vector_store %arg7[%c0_51, %c0_52, %c0_53], %69 {strides = array<i32>} : memref<1x8x8xf32, #tpu.memory_space<vmem>>, vector<1x8x8xf32>,
      %cst_54 = arith.constant 0.000000e+00 : f32
      %70 = vector.broadcast %cst_54 : f32 to vector<8x8xf32>
      %c0_55 = arith.constant 0 : index
      %c0_56 = arith.constant 0 : index
      %c0_57 = arith.constant 0 : index
      %71 = vector.load %arg8[%c0_55, %c0_56, %c0_57] : memref<1x8x8xf32, #tpu.memory_space<vmem>>, vector<1x8x8xf32>
      %72 = vector.shape_cast %71 : vector<1x8x8xf32> to vector<8x8xf32>
      %73 = vector.shape_cast %70 : vector<8x8xf32> to vector<1x8x8xf32>
      tpu.vector_store %arg8[%c0_55, %c0_56, %c0_57], %73 {strides = array<i32>} : memref<1x8x8xf32, #tpu.memory_space<vmem>>, vector<1x8x8xf32>,
      %cst_58 = arith.constant 0.000000e+00 : f32
      %74 = vector.broadcast %cst_58 : f32 to vector<1x8xf32>
      %c0_59 = arith.constant 0 : index
      %c0_60 = arith.constant 0 : index
      %c0_61 = arith.constant 0 : index
      %75 = vector.load %arg9[%c0_59, %c0_60, %c0_61] : memref<1x1x8xf32, #tpu.memory_space<vmem>>, vector<1x1x8xf32>
      %76 = vector.shape_cast %75 : vector<1x1x8xf32> to vector<1x8xf32>
      %77 = vector.shape_cast %74 : vector<1x8xf32> to vector<1x1x8xf32>
      tpu.vector_store %arg9[%c0_59, %c0_60, %c0_61], %77 {strides = array<i32>} : memref<1x1x8xf32, #tpu.memory_space<vmem>>, vector<1x1x8xf32>,
      %cst_62 = arith.constant 0.000000e+00 : f32
      %78 = vector.broadcast %cst_62 : f32 to vector<1x8xf32>
      %c0_63 = arith.constant 0 : index
      %c0_64 = arith.constant 0 : index
      %c0_65 = arith.constant 0 : index
      %79 = vector.load %arg10[%c0_63, %c0_64, %c0_65] : memref<1x1x8xf32, #tpu.memory_space<vmem>>, vector<1x1x8xf32>
      %80 = vector.shape_cast %79 : vector<1x1x8xf32> to vector<1x8xf32>
      %81 = vector.shape_cast %78 : vector<1x8xf32> to vector<1x1x8xf32>
      tpu.vector_store %arg10[%c0_63, %c0_64, %c0_65], %81 {strides = array<i32>} : memref<1x1x8xf32, #tpu.memory_space<vmem>>, vector<1x1x8xf32>,
    } else {
    }
    %c1_i32 = arith.constant 1 : i32
    %3 = arith.muli %arg0, %c1_i32 : i32
    %4 = arith.addi %3, %arg1 : i32
    %c16_i32 = arith.constant 16 : i32
    %5 = arith.muli %4, %c16_i32 : i32
    %c16_i32_1 = arith.constant 16 : i32
    %6 = arith.subi %c16_i32_1, %5 : i32
    %7 = tpu.iota {dimensions = array<i32: 0>} : vector<16x1xi32>
    %8 = vector.broadcast %6 : i32 to vector<16x1xi32>
    %9 = arith.cmpi slt, %7, %8 : vector<16x1xi32>
    %c0 = arith.constant 0 : index
    %c0_2 = arith.constant 0 : index
    %10 = vector.load %arg2[%c0, %c0_2] : memref<16x8xf32, #tpu.memory_space<vmem>>, vector<16x8xf32>
    %c0_3 = arith.constant 0 : index
    %c0_4 = arith.constant 0 : index
    %11 = vector.load %arg4[%c0_3, %c0_4] : memref<1x8xf32, #tpu.memory_space<vmem>>, vector<1x8xf32>
    %12 = vector.broadcast %11 : vector<1x8xf32> to vector<16x8xf32>
    %13 = arith.subf %10, %12 : vector<16x8xf32>
    %c0_5 = arith.constant 0 : index
    %c0_6 = arith.constant 0 : index
    %14 = vector.load %arg3[%c0_5, %c0_6] : memref<16x8xf32, #tpu.memory_space<vmem>>, vector<16x8xf32>
    %c0_7 = arith.constant 0 : index
    %c0_8 = arith.constant 0 : index
    %15 = vector.load %arg5[%c0_7, %c0_8] : memref<1x8xf32, #tpu.memory_space<vmem>>, vector<1x8xf32>
    %16 = vector.broadcast %15 : vector<1x8xf32> to vector<16x8xf32>
    %17 = arith.subf %14, %16 : vector<16x8xf32>
    %cst = arith.constant 0.000000e+00 : f32
    %18 = vector.broadcast %cst : f32 to vector<16x8xf32>
    %19 = vector.shape_cast %9 : vector<16x1xi1> to vector<16x1xi1>
    %20 = vector.broadcast %19 : vector<16x1xi1> to vector<16x8xi1>
    %21 = arith.select %20, %13, %18 : vector<16x8xi1>, vector<16x8xf32>
    %cst_9 = arith.constant 0.000000e+00 : f32
    %22 = vector.broadcast %cst_9 : f32 to vector<16x8xf32>
    %23 = vector.shape_cast %9 : vector<16x1xi1> to vector<16x1xi1>
    %24 = vector.broadcast %23 : vector<16x1xi1> to vector<16x8xi1>
    %25 = arith.select %24, %17, %22 : vector<16x8xi1>, vector<16x8xf32>
    %c0_10 = arith.constant 0 : index
    %c0_11 = arith.constant 0 : index
    %c0_12 = arith.constant 0 : index
    %26 = vector.load %arg6[%c0_10, %c0_11, %c0_12] : memref<1x8x8xf32, #tpu.memory_space<vmem>>, vector<1x8x8xf32>
    %27 = vector.shape_cast %26 : vector<1x8x8xf32> to vector<8x8xf32>
    %cst_13 = arith.constant dense<0.000000e+00> : vector<8x8xf32>
    %28 = tpu.matmul %21, %21, %cst_13 {dimension_numbers = #tpu.dot_dimension_numbers<[0], [0], [1], [1], [0, 1, 1, 1], [], []>} : vector<16x8xf32>, vector<16x8xf32>, vector<8x8xf32> -> vector<8x8xf32>
    %29 = arith.addf %27, %28 : vector<8x8xf32>
    %c0_14 = arith.constant 0 : index
    %c0_15 = arith.constant 0 : index
    %c0_16 = arith.constant 0 : index
    %30 = vector.load %arg6[%c0_14, %c0_15, %c0_16] : memref<1x8x8xf32, #tpu.memory_space<vmem>>, vector<1x8x8xf32>
    %31 = vector.shape_cast %30 : vector<1x8x8xf32> to vector<8x8xf32>
    %32 = vector.shape_cast %29 : vector<8x8xf32> to vector<1x8x8xf32>
    tpu.vector_store %arg6[%c0_14, %c0_15, %c0_16], %32 {strides = array<i32>} : memref<1x8x8xf32, #tpu.memory_space<vmem>>, vector<1x8x8xf32>,
    %c0_17 = arith.constant 0 : index
    %c0_18 = arith.constant 0 : index
    %c0_19 = arith.constant 0 : index
    %33 = vector.load %arg7[%c0_17, %c0_18, %c0_19] : memref<1x8x8xf32, #tpu.memory_space<vmem>>, vector<1x8x8xf32>
    %34 = vector.shape_cast %33 : vector<1x8x8xf32> to vector<8x8xf32>
    %cst_20 = arith.constant dense<0.000000e+00> : vector<8x8xf32>
    %35 = tpu.matmul %21, %25, %cst_20 {dimension_numbers = #tpu.dot_dimension_numbers<[0], [0], [1], [1], [0, 1, 1, 1], [], []>} : vector<16x8xf32>, vector<16x8xf32>, vector<8x8xf32> -> vector<8x8xf32>
    %36 = arith.addf %34, %35 : vector<8x8xf32>
    %c0_21 = arith.constant 0 : index
    %c0_22 = arith.constant 0 : index
    %c0_23 = arith.constant 0 : index
    %37 = vector.load %arg7[%c0_21, %c0_22, %c0_23] : memref<1x8x8xf32, #tpu.memory_space<vmem>>, vector<1x8x8xf32>
    %38 = vector.shape_cast %37 : vector<1x8x8xf32> to vector<8x8xf32>
    %39 = vector.shape_cast %36 : vector<8x8xf32> to vector<1x8x8xf32>
    tpu.vector_store %arg7[%c0_21, %c0_22, %c0_23], %39 {strides = array<i32>} : memref<1x8x8xf32, #tpu.memory_space<vmem>>, vector<1x8x8xf32>,
    %c0_24 = arith.constant 0 : index
    %c0_25 = arith.constant 0 : index
    %c0_26 = arith.constant 0 : index
    %40 = vector.load %arg8[%c0_24, %c0_25, %c0_26] : memref<1x8x8xf32, #tpu.memory_space<vmem>>, vector<1x8x8xf32>
    %41 = vector.shape_cast %40 : vector<1x8x8xf32> to vector<8x8xf32>
    %cst_27 = arith.constant dense<0.000000e+00> : vector<8x8xf32>
    %42 = tpu.matmul %25, %25, %cst_27 {dimension_numbers = #tpu.dot_dimension_numbers<[0], [0], [1], [1], [0, 1, 1, 1], [], []>} : vector<16x8xf32>, vector<16x8xf32>, vector<8x8xf32> -> vector<8x8xf32>
    %43 = arith.addf %41, %42 : vector<8x8xf32>
    %c0_28 = arith.constant 0 : index
    %c0_29 = arith.constant 0 : index
    %c0_30 = arith.constant 0 : index
    %44 = vector.load %arg8[%c0_28, %c0_29, %c0_30] : memref<1x8x8xf32, #tpu.memory_space<vmem>>, vector<1x8x8xf32>
    %45 = vector.shape_cast %44 : vector<1x8x8xf32> to vector<8x8xf32>
    %46 = vector.shape_cast %43 : vector<8x8xf32> to vector<1x8x8xf32>
    tpu.vector_store %arg8[%c0_28, %c0_29, %c0_30], %46 {strides = array<i32>} : memref<1x8x8xf32, #tpu.memory_space<vmem>>, vector<1x8x8xf32>,
    %cst_31 = arith.constant 1.000000e+00 : f32
    %47 = vector.broadcast %cst_31 : f32 to vector<1x16xf32>
    %c0_32 = arith.constant 0 : index
    %c0_33 = arith.constant 0 : index
    %c0_34 = arith.constant 0 : index
    %48 = vector.load %arg9[%c0_32, %c0_33, %c0_34] : memref<1x1x8xf32, #tpu.memory_space<vmem>>, vector<1x1x8xf32>
    %49 = vector.shape_cast %48 : vector<1x1x8xf32> to vector<1x8xf32>
    %cst_35 = arith.constant dense<0.000000e+00> : vector<1x8xf32>
    %50 = tpu.matmul %47, %21, %cst_35 {dimension_numbers = #tpu.dot_dimension_numbers<[1], [0], [0], [1], [0, 0, 1, 1], [], []>} : vector<1x16xf32>, vector<16x8xf32>, vector<1x8xf32> -> vector<1x8xf32>
    %51 = arith.addf %49, %50 : vector<1x8xf32>
    %c0_36 = arith.constant 0 : index
    %c0_37 = arith.constant 0 : index
    %c0_38 = arith.constant 0 : index
    %52 = vector.load %arg9[%c0_36, %c0_37, %c0_38] : memref<1x1x8xf32, #tpu.memory_space<vmem>>, vector<1x1x8xf32>
    %53 = vector.shape_cast %52 : vector<1x1x8xf32> to vector<1x8xf32>
    %54 = vector.shape_cast %51 : vector<1x8xf32> to vector<1x1x8xf32>
    tpu.vector_store %arg9[%c0_36, %c0_37, %c0_38], %54 {strides = array<i32>} : memref<1x1x8xf32, #tpu.memory_space<vmem>>, vector<1x1x8xf32>,
    %c0_39 = arith.constant 0 : index
    %c0_40 = arith.constant 0 : index
    %c0_41 = arith.constant 0 : index
    %55 = vector.load %arg10[%c0_39, %c0_40, %c0_41] : memref<1x1x8xf32, #tpu.memory_space<vmem>>, vector<1x1x8xf32>
    %56 = vector.shape_cast %55 : vector<1x1x8xf32> to vector<1x8xf32>
    %cst_42 = arith.constant dense<0.000000e+00> : vector<1x8xf32>
    %57 = tpu.matmul %47, %25, %cst_42 {dimension_numbers = #tpu.dot_dimension_numbers<[1], [0], [0], [1], [0, 0, 1, 1], [], []>} : vector<1x16xf32>, vector<16x8xf32>, vector<1x8xf32> -> vector<1x8xf32>
    %58 = arith.addf %56, %57 : vector<1x8xf32>
    %c0_43 = arith.constant 0 : index
    %c0_44 = arith.constant 0 : index
    %c0_45 = arith.constant 0 : index
    %59 = vector.load %arg10[%c0_43, %c0_44, %c0_45] : memref<1x1x8xf32, #tpu.memory_space<vmem>>, vector<1x1x8xf32>
    %60 = vector.shape_cast %59 : vector<1x1x8xf32> to vector<1x8xf32>
    %61 = vector.shape_cast %58 : vector<1x8xf32> to vector<1x1x8xf32>
    tpu.vector_store %arg10[%c0_43, %c0_44, %c0_45], %61 {strides = array<i32>} : memref<1x1x8xf32, #tpu.memory_space<vmem>>, vector<1x1x8xf32>,
    return
  }
  func.func @transform_0(%arg0: i32, %arg1: i32) -> (i32, i32) {
    %c1_i32 = arith.constant 1 : i32
    %0 = arith.muli %arg0, %c1_i32 : i32
    %1 = arith.addi %0, %arg1 : i32
    %c0_i32 = arith.constant 0 : i32
    %2 = arith.minsi %1, %c0_i32 : i32
    %c0_i32_0 = arith.constant 0 : i32
    %c0_i32_1 = arith.constant 0 : i32
    return %2, %c0_i32_0 : i32, i32
  }
  func.func @transform_1(%arg0: i32, %arg1: i32) -> (i32, i32) {
    %c1_i32 = arith.constant 1 : i32
    %0 = arith.muli %arg0, %c1_i32 : i32
    %1 = arith.addi %0, %arg1 : i32
    %c0_i32 = arith.constant 0 : i32
    %2 = arith.minsi %1, %c0_i32 : i32
    %c0_i32_0 = arith.constant 0 : i32
    %c0_i32_1 = arith.constant 0 : i32
    return %2, %c0_i32_0 : i32, i32
  }
  func.func @transform_2(%arg0: i32, %arg1: i32) -> (i32, i32) {
    %c0_i32 = arith.constant 0 : i32
    %c0_i32_0 = arith.constant 0 : i32
    %c0_i32_1 = arith.constant 0 : i32
    return %c0_i32, %c0_i32_0 : i32, i32
  }
  func.func @transform_3(%arg0: i32, %arg1: i32) -> (i32, i32) {
    %c0_i32 = arith.constant 0 : i32
    %c0_i32_0 = arith.constant 0 : i32
    %c0_i32_1 = arith.constant 0 : i32
    return %c0_i32, %c0_i32_0 : i32, i32
  }
  func.func @transform_4(%arg0: i32, %arg1: i32) -> (i32, i32, i32) {
    %c0_i32 = arith.constant 0 : i32
    %c0_i32_0 = arith.constant 0 : i32
    %c0_i32_1 = arith.constant 0 : i32
    return %arg0, %c0_i32, %c0_i32_0 : i32, i32, i32
  }
  func.func @transform_5(%arg0: i32, %arg1: i32) -> (i32, i32, i32) {
    %c0_i32 = arith.constant 0 : i32
    %c0_i32_0 = arith.constant 0 : i32
    %c0_i32_1 = arith.constant 0 : i32
    return %arg0, %c0_i32, %c0_i32_0 : i32, i32, i32
  }
  func.func @transform_6(%arg0: i32, %arg1: i32) -> (i32, i32, i32) {
    %c0_i32 = arith.constant 0 : i32
    %c0_i32_0 = arith.constant 0 : i32
    %c0_i32_1 = arith.constant 0 : i32
    return %arg0, %c0_i32, %c0_i32_0 : i32, i32, i32
  }
  func.func @transform_7(%arg0: i32, %arg1: i32) -> (i32, i32, i32) {
    %c0_i32 = arith.constant 0 : i32
    %c0_i32_0 = arith.constant 0 : i32
    %c0_i32_1 = arith.constant 0 : i32
    return %arg0, %c0_i32, %c0_i32_0 : i32, i32, i32
  }
  func.func @transform_8(%arg0: i32, %arg1: i32) -> (i32, i32, i32) {
    %c0_i32 = arith.constant 0 : i32
    %c0_i32_0 = arith.constant 0 : i32
    %c0_i32_1 = arith.constant 0 : i32
    return %arg0, %c0_i32, %c0_i32_0 : i32, i32, i32
  }
}

</mosaic_0001>

<llo_original>
// kernel: tpu_custom_call.1
$region0: #{tpu_custom_call.1}
  #allocation0 [shape = 'u32[]', space=smem, size = 0x4, offset = 0x4, fixed_abs, tag = 'smem constant byte address 0x4 - core index']
  #allocation1 [shape = 'u32[144,128]{1,0:T(1,128)}', space=vmem, size = 0x12000, scoped, tag = 'internal scratch']
  %s0 = inlined_call_operand.vmem [shape: f32[16,8], index: 0, kind: input, shape index: {}]
  %s1 = inlined_call_operand.vmem [shape: f32[16,8], index: 1, kind: input, shape index: {}]
  %s2 = inlined_call_operand.vmem [shape: f32[1,8], index: 2, kind: input, shape index: {}]
  %s3 = inlined_call_operand.vmem [shape: f32[1,8], index: 3, kind: input, shape index: {}]
  %s4 = inlined_call_operand.hbm [shape: f32[2,8,8], index: 4, kind: output, shape index: {0}]
  %s5 = inlined_call_operand.hbm [shape: f32[2,8,8], index: 5, kind: output, shape index: {1}]
  %s6 = inlined_call_operand.hbm [shape: f32[2,8,8], index: 6, kind: output, shape index: {2}]
  %s7 = inlined_call_operand.hbm [shape: f32[2,1,8], index: 7, kind: output, shape index: {3}]
  %s8 = inlined_call_operand.hbm [shape: f32[2,1,8], index: 8, kind: output, shape index: {4}]
  %9 = xla_tuple %s4, %s5, %s6, %s7, %s8
  %s10 = sld [smem:[#allocation0]]
  $region85: #{tpu_custom_call.1} parent=0
    _
  %s12 = ssub.s32 1, %s10
  %s13 = scalar_select 0, %s12, %s10
  $region1: #{tpu_custom_call.1} parent=0
    #allocation2 [shape = 'u8[8192]{0}', space=vmem, size = 0x2000, scoped, tag = 'output window, operand 0']
    #allocation3 [shape = 's32[2]{0}', space=sflag, size = 0x8, scoped, tag = 'scoped memory for tpu_custom_call.1']
    #allocation4 [shape = 'u8[8192]{0}', space=vmem, size = 0x2000, scoped, tag = 'output window, operand 1']
    #allocation5 [shape = 's32[2]{0}', space=sflag, size = 0x8, scoped, tag = 'scoped memory for tpu_custom_call.1']
    #allocation6 [shape = 'u8[8192]{0}', space=vmem, size = 0x2000, scoped, tag = 'output window, operand 2']
    #allocation7 [shape = 'u8[1024]{0}', space=vmem, size = 0x400, scoped, tag = 'output window, operand 3']
    #allocation8 [shape = 's32[2]{0}', space=sflag, size = 0x8, scoped, tag = 'scoped memory for tpu_custom_call.1']
    #allocation9 [shape = 'u8[1024]{0}', space=vmem, size = 0x400, scoped, tag = 'output window, operand 4']
    %14 = vsyncpa [#allocation3], 0
    %s15 = scalar_lea.sflag [#allocation3], 1
    %16 = vsyncpa %s15, 0
    %17 = vsyncpa [#allocation5], 0
    %s18 = scalar_lea.sflag [#allocation5], 1
    %19 = vsyncpa %s18, 0
    %20 = vsyncpa [#allocation8], 0
    %s21 = scalar_lea.sflag [#allocation8], 1
    %22 = vsyncpa %s21, 0
    loop: start=0, step=1, limit=4
    $region2: #{tpu_custom_call.1} parent=1 // loop_pre_header
      _
    $region3: #{tpu_custom_call.1} parent=1 // loop_header
      %s24 = sphi 0, %s28
      %p25 = scmp.ge.s32.totalorder %s24, 4
      %s31 = sphi 0, %s43
      %s32 = sphi 0, %s39
      %s33 = sphi 0, %s31
      %s34 = sphi 0, %s32
      %s35 = sphi 0, %s33
      %s36 = sphi 0, %s34
      %s52 = sphi 0, %s54
      %s55 = sphi 0, %s52
      %s56 = sphi 0, %s55
      %s72 = sphi 0, %s56
      %s84 = sphi 0, %s86
      %s87 = sphi 0, %s84
      %s88 = sphi 0, %s87
      %s104 = sphi 0, %s88
      %s108 = sphi 0, %s108
      %s110 = sphi 0, %s108
      %s111 = sphi 0, %s110
      %s125 = sphi 0, %s111
      %s129 = sphi 0, %s129
      %s131 = sphi 0, %s129
      %s132 = sphi 0, %s131
      %s146 = sphi 0, %s132
      %s152 = sphi 0, %s154
      %s155 = sphi 0, %s152
      %s156 = sphi 0, %s155
      %s172 = sphi 0, %s156
      %s178 = sphi 0, %s180
      %s181 = sphi 0, %s178
      %s182 = sphi 0, %s181
      %s198 = sphi 0, %s182
      %s204 = sphi 0, %s206
      %s207 = sphi 0, %s204
      %s208 = sphi 0, %s207
      %s224 = sphi 0, %s208
      %s230 = sphi 0, %s232
      %s233 = sphi 0, %s230
      %s234 = sphi 0, %s233
      %s250 = sphi 0, %s234
      %s256 = sphi 0, %s258
      %s259 = sphi 0, %s256
      %s260 = sphi 0, %s259
      %s276 = sphi 0, %s260
    $region4: #{tpu_custom_call.1} parent=1 // loop_header_branch
      %27 = sbr.rel (%p25) target = $region8
    $region5: #{tpu_custom_call.1} parent=1 // loop_body
      %s29 = ssub.s32 %s24, 1
      %s30 = ssub.s32 %s24, 2
      %s37 = sadd.s32 1, %s32
      %p38 = scmp.ge.s32.totalorder %s37, 1
      %s39 = scalar_select %p38, 0, %s37
      %s40 = sadd.s32 1, %s31
      %s41 = scalar_select %p38, %s40, %s31
      %p42 = scmp.ge.s32.totalorder %s41, 2
      %s43 = scalar_select %p42, 0, %s41
      %s44 = sadd.s32 %s31, %s32
      %p45 = scmp.lt.s32.totalorder %s44, 0
      %s46 = scalar_select %p45, %s44, 0
      %s47 = sadd.s32 %s43, %s39
      %p48 = scmp.lt.s32.totalorder %s47, 0
      %s49 = scalar_select %p48, %s47, 0
      %s50 = ssub.s32 %s46, %s49
      %p51 = scmp.eq.s32.totalorder %s50, 0
      %s53 = sadd.s32 %s52, 1
      %s54 = scalar_select %p51, %s52, %s53
      %p57 = pneg %p51
      %p58 = scmp.eq.s32.totalorder %s24, 1
      %p59 = por %p57, %p58
      %p60 = scmp.ne.s32.totalorder %s52, %s55
      %p61 = scmp.eq.s32.totalorder %s24, 0
      %p62 = por %p60, %p61
      %p63 = scmp.ne.s32.totalorder %s52, %s55
      %p64 = scmp.eq.s32.totalorder %s29, 1
      %p65 = por %p63, %p64
      %p66 = scmp.ne.s32.totalorder %s55, %s56
      %p67 = scmp.eq.s32.totalorder %s29, 0
      %p68 = por %p66, %p67
      %p69 = scmp.ne.s32.totalorder %s55, %s56
      %p70 = scmp.eq.s32.totalorder %s30, 1
      %p71 = por %p69, %p70
      %p73 = scmp.ne.s32.totalorder %s56, %s72
      %p74 = scmp.eq.s32.totalorder %s30, 0
      %p75 = por %p73, %p74
      %s76 = sadd.s32 %s31, %s32
      %p77 = scmp.lt.s32.totalorder %s76, 0
      %s78 = scalar_select %p77, %s76, 0
      %s79 = sadd.s32 %s43, %s39
      %p80 = scmp.lt.s32.totalorder %s79, 0
      %s81 = scalar_select %p80, %s79, 0
      %s82 = ssub.s32 %s78, %s81
      %p83 = scmp.eq.s32.totalorder %s82, 0
      %s85 = sadd.s32 %s84, 1
      %s86 = scalar_select %p83, %s84, %s85
      %p89 = pneg %p83
      %p90 = scmp.eq.s32.totalorder %s24, 1
      %p91 = por %p89, %p90
      %p92 = scmp.ne.s32.totalorder %s84, %s87
      %p93 = scmp.eq.s32.totalorder %s24, 0
      %p94 = por %p92, %p93
      %p95 = scmp.ne.s32.totalorder %s84, %s87
      %p96 = scmp.eq.s32.totalorder %s29, 1
      %p97 = por %p95, %p96
      %p98 = scmp.ne.s32.totalorder %s87, %s88
      %p99 = scmp.eq.s32.totalorder %s29, 0
      %p100 = por %p98, %p99
      %p101 = scmp.ne.s32.totalorder %s87, %s88
      %p102 = scmp.eq.s32.totalorder %s30, 1
      %p103 = por %p101, %p102
      %p105 = scmp.ne.s32.totalorder %s88, %s104
      %p106 = scmp.eq.s32.totalorder %s30, 0
      %p107 = por %p105, %p106
      %s109 = sadd.s32 %s108, 1
      %p112 = scmp.eq.s32.totalorder %s24, 1
      %p113 = scmp.ne.s32.totalorder %s108, %s110
      %p114 = scmp.eq.s32.totalorder %s24, 0
      %p115 = por %p113, %p114
      %p116 = scmp.ne.s32.totalorder %s108, %s110
      %p117 = scmp.eq.s32.totalorder %s29, 1
      %p118 = por %p116, %p117
      %p119 = scmp.ne.s32.totalorder %s110, %s111
      %p120 = scmp.eq.s32.totalorder %s29, 0
      %p121 = por %p119, %p120
      %p122 = scmp.ne.s32.totalorder %s110, %s111
      %p123 = scmp.eq.s32.totalorder %s30, 1
      %p124 = por %p122, %p123
      %p126 = scmp.ne.s32.totalorder %s111, %s125
      %p127 = scmp.eq.s32.totalorder %s30, 0
      %p128 = por %p126, %p127
      %s130 = sadd.s32 %s129, 1
      %p133 = scmp.eq.s32.totalorder %s24, 1
      %p134 = scmp.ne.s32.totalorder %s129, %s131
      %p135 = scmp.eq.s32.totalorder %s24, 0
      %p136 = por %p134, %p135
      %p137 = scmp.ne.s32.totalorder %s129, %s131
      %p138 = scmp.eq.s32.totalorder %s29, 1
      %p139 = por %p137, %p138
      %p140 = scmp.ne.s32.totalorder %s131, %s132
      %p141 = scmp.eq.s32.totalorder %s29, 0
      %p142 = por %p140, %p141
      %p143 = scmp.ne.s32.totalorder %s131, %s132
      %p144 = scmp.eq.s32.totalorder %s30, 1
      %p145 = por %p143, %p144
      %p147 = scmp.ne.s32.totalorder %s132, %s146
      %p148 = scmp.eq.s32.totalorder %s30, 0
      %p149 = por %p147, %p148
      %s150 = ssub.s32 %s31, %s43
      %p151 = scmp.eq.s32.totalorder %s150, 0
      %s153 = sadd.s32 %s152, 1
      %s154 = scalar_select %p151, %s152, %s153
      %p157 = pneg %p151
      %p158 = scmp.eq.s32.totalorder %s24, 1
      %p159 = por %p157, %p158
      %p160 = scmp.ne.s32.totalorder %s152, %s155
      %p161 = scmp.eq.s32.totalorder %s24, 0
      %p162 = por %p160, %p161
      %p163 = scmp.ne.s32.totalorder %s152, %s155
      %p164 = scmp.eq.s32.totalorder %s29, 1
      %p165 = por %p163, %p164
      %p166 = scmp.ne.s32.totalorder %s155, %s156
      %p167 = scmp.eq.s32.totalorder %s29, 0
      %p168 = por %p166, %p167
      %p169 = scmp.ne.s32.totalorder %s155, %s156
      %p170 = scmp.eq.s32.totalorder %s30, 1
      %p171 = por %p169, %p170
      %p173 = scmp.ne.s32.totalorder %s156, %s172
      %p174 = scmp.eq.s32.totalorder %s30, 0
      %p175 = por %p173, %p174
      %s176 = ssub.s32 %s31, %s43
      %p177 = scmp.eq.s32.totalorder %s176, 0
      %s179 = sadd.s32 %s178, 1
      %s180 = scalar_select %p177, %s178, %s179
      %p183 = pneg %p177
      %p184 = scmp.eq.s32.totalorder %s24, 1
      %p185 = por %p183, %p184
      %p186 = scmp.ne.s32.totalorder %s178, %s181
      %p187 = scmp.eq.s32.totalorder %s24, 0
      %p188 = por %p186, %p187
      %p189 = scmp.ne.s32.totalorder %s178, %s181
      %p190 = scmp.eq.s32.totalorder %s29, 1
      %p191 = por %p189, %p190
      %p192 = scmp.ne.s32.totalorder %s181, %s182
      %p193 = scmp.eq.s32.totalorder %s29, 0
      %p194 = por %p192, %p193
      %p195 = scmp.ne.s32.totalorder %s181, %s182
      %p196 = scmp.eq.s32.totalorder %s30, 1
      %p197 = por %p195, %p196
      %p199 = scmp.ne.s32.totalorder %s182, %s198
      %p200 = scmp.eq.s32.totalorder %s30, 0
      %p201 = por %p199, %p200
      %s202 = ssub.s32 %s31, %s43
      %p203 = scmp.eq.s32.totalorder %s202, 0
      %s205 = sadd.s32 %s204, 1
      %s206 = scalar_select %p203, %s204, %s205
      %p209 = pneg %p203
      %p210 = scmp.eq.s32.totalorder %s24, 1
      %p211 = por %p209, %p210
      %p212 = scmp.ne.s32.totalorder %s204, %s207
      %p213 = scmp.eq.s32.totalorder %s24, 0
      %p214 = por %p212, %p213
      %p215 = scmp.ne.s32.totalorder %s204, %s207
      %p216 = scmp.eq.s32.totalorder %s29, 1
      %p217 = por %p215, %p216
      %p218 = scmp.ne.s32.totalorder %s207, %s208
      %p219 = scmp.eq.s32.totalorder %s29, 0
      %p220 = por %p218, %p219
      %p221 = scmp.ne.s32.totalorder %s207, %s208
      %p222 = scmp.eq.s32.totalorder %s30, 1
      %p223 = por %p221, %p222
      %p225 = scmp.ne.s32.totalorder %s208, %s224
      %p226 = scmp.eq.s32.totalorder %s30, 0
      %p227 = por %p225, %p226
      %s228 = ssub.s32 %s31, %s43
      %p229 = scmp.eq.s32.totalorder %s228, 0
      %s231 = sadd.s32 %s230, 1
      %s232 = scalar_select %p229, %s230, %s231
      %p235 = pneg %p229
      %p236 = scmp.eq.s32.totalorder %s24, 1
      %p237 = por %p235, %p236
      %p238 = scmp.ne.s32.totalorder %s230, %s233
      %p239 = scmp.eq.s32.totalorder %s24, 0
      %p240 = por %p238, %p239
      %p241 = scmp.ne.s32.totalorder %s230, %s233
      %p242 = scmp.eq.s32.totalorder %s29, 1
      %p243 = por %p241, %p242
      %p244 = scmp.ne.s32.totalorder %s233, %s234
      %p245 = scmp.eq.s32.totalorder %s29, 0
      %p246 = por %p244, %p245
      %p247 = scmp.ne.s32.totalorder %s233, %s234
      %p248 = scmp.eq.s32.totalorder %s30, 1
      %p249 = por %p247, %p248
      %p251 = scmp.ne.s32.totalorder %s234, %s250
      %p252 = scmp.eq.s32.totalorder %s30, 0
      %p253 = por %p251, %p252
      %s254 = ssub.s32 %s31, %s43
      %p255 = scmp.eq.s32.totalorder %s254, 0
      %s257 = sadd.s32 %s256, 1
      %s258 = scalar_select %p255, %s256, %s257
      %p261 = pneg %p255
      %p262 = scmp.eq.s32.totalorder %s24, 1
      %p263 = por %p261, %p262
      %p264 = scmp.ne.s32.totalorder %s256, %s259
      %p265 = scmp.eq.s32.totalorder %s24, 0
      %p266 = por %p264, %p265
      %p267 = scmp.ne.s32.totalorder %s256, %s259
      %p268 = scmp.eq.s32.totalorder %s29, 1
      %p269 = por %p267, %p268
      %p270 = scmp.ne.s32.totalorder %s259, %s260
      %p271 = scmp.eq.s32.totalorder %s29, 0
      %p272 = por %p270, %p271
      %p273 = scmp.ne.s32.totalorder %s259, %s260
      %p274 = scmp.eq.s32.totalorder %s30, 1
      %p275 = por %p273, %p274
      %p277 = scmp.ne.s32.totalorder %s260, %s276
      %p278 = scmp.eq.s32.totalorder %s30, 0
      %p279 = por %p277, %p278
      %p280 = scmp.le.s32.totalorder 1, %s24
      %p281 = scmp.lt.s32.totalorder %s24, 3
      %p282 = pnand %p280, %p281
      %p283 = pneg %p282
      // Predicated region
      $region9: #{tpu_custom_call.1} parent=5 // pred_check
        _
      $region10: #{tpu_custom_call.1} parent=5 // pred_check_branch
        %285 = sbr.rel (%p282) target = $region12
      $region11: #{tpu_custom_call.1} parent=5 // pred_region
        %s286 = ssub.s32 %s24, 1
        // Predicated region
        $region13: #{tpu_custom_call.1} parent=11 // pred_check
          %p287 = pneg %p121
        $region14: #{tpu_custom_call.1} parent=11 // pred_check_branch
          %289 = sbr.rel (%p287) target = $region16
        $region15: #{tpu_custom_call.1} parent=11 // pred_region
          _
        $region16: #{tpu_custom_call.1} parent=11 // pred_fallthru
          _
        // Predicated region
        $region17: #{tpu_custom_call.1} parent=11 // pred_check
          %p290 = pneg %p142
        $region18: #{tpu_custom_call.1} parent=11 // pred_check_branch
          %292 = sbr.rel (%p290) target = $region20
        $region19: #{tpu_custom_call.1} parent=11 // pred_region
          _
        $region20: #{tpu_custom_call.1} parent=11 // pred_fallthru
          _
      $region12: #{tpu_custom_call.1} parent=5 // pred_fallthru
        _
      %p293 = scmp.lt.s32.totalorder %s24, 2
      // Predicated region
      $region21: #{tpu_custom_call.1} parent=5 // pred_check
        %p294 = pneg %p293
      $region22: #{tpu_custom_call.1} parent=5 // pred_check_branch
        %296 = sbr.rel (%p294) target = $region24
      $region23: #{tpu_custom_call.1} parent=5 // pred_region
        // Predicated region
        $region25: #{tpu_custom_call.1} parent=23 // pred_check
          %p297 = pneg %p62
        $region26: #{tpu_custom_call.1} parent=23 // pred_check_branch
          %299 = sbr.rel (%p297) target = $region28
        $region27: #{tpu_custom_call.1} parent=23 // pred_region
          %s300 = sadd.s32 %s31, %s32
          %p301 = scmp.lt.s32.totalorder %s300, 0
          %s302 = scalar_select %p301, %s300, 0
          %s303 = smul.u32 2, %s302
          %p304 = scmp.lt.s32.totalorder %s303, 1
          %s305 = scalar_select %p304, %s303, 1
          %s306 = smul.addr %s305, 8
          %s307 = scalar_lea.vmem %s0, %s306
          %s308 = sadd.s32 %s31, %s32
          %p309 = scmp.lt.s32.totalorder %s308, 0
          %s310 = scalar_select %p309, %s308, 0
          %s311 = smul.u32 2, %s310
        $region28: #{tpu_custom_call.1} parent=23 // pred_fallthru
          _
        // Predicated region
        $region29: #{tpu_custom_call.1} parent=23 // pred_check
          %p312 = pneg %p94
        $region30: #{tpu_custom_call.1} parent=23 // pred_check_branch
          %314 = sbr.rel (%p312) target = $region32
        $region31: #{tpu_custom_call.1} parent=23 // pred_region
          %s315 = sadd.s32 %s31, %s32
          %p316 = scmp.lt.s32.totalorder %s315, 0
          %s317 = scalar_select %p316, %s315, 0
          %s318 = smul.u32 2, %s317
          %p319 = scmp.lt.s32.totalorder %s318, 1
          %s320 = scalar_select %p319, %s318, 1
          %s321 = smul.addr %s320, 8
          %s322 = scalar_lea.vmem %s1, %s321
          %s323 = sadd.s32 %s31, %s32
          %p324 = scmp.lt.s32.totalorder %s323, 0
          %s325 = scalar_select %p324, %s323, 0
          %s326 = smul.u32 2, %s325
        $region32: #{tpu_custom_call.1} parent=23 // pred_fallthru
          _
      $region24: #{tpu_custom_call.1} parent=5 // pred_fallthru
        _
      %p327 = scmp.le.s32.totalorder 1, %s24
      %p328 = scmp.lt.s32.totalorder %s24, 3
      %p329 = pnand %p327, %p328
      %p330 = pneg %p329
      // Predicated region
      $region33: #{tpu_custom_call.1} parent=5 // pred_check
        _
      $region34: #{tpu_custom_call.1} parent=5 // pred_check_branch
        %332 = sbr.rel (%p329) target = $region36
      $region35: #{tpu_custom_call.1} parent=5 // pred_region
        %s333 = ssub.s32 %s24, 1
        %s334 = sadd.s32 %s33, %s34
        %p335 = scmp.lt.s32.totalorder %s334, 0
        %s336 = scalar_select %p335, %s334, 0
        %s337 = smul.u32 2, %s336
        %p338 = scmp.lt.s32.totalorder %s337, 1
        %s339 = scalar_select %p338, %s337, 1
        %s340 = smul.addr %s339, 8
        %s341 = scalar_lea.vmem %s0, %s340
        %p342 = pneg %p68
        %p343 = pneg %p65
        %s344 = sadd.s32 %s33, %s34
        %p345 = scmp.lt.s32.totalorder %s344, 0
        %s346 = scalar_select %p345, %s344, 0
        %s347 = smul.u32 2, %s346
        %p348 = scmp.lt.s32.totalorder %s347, 1
        %s349 = scalar_select %p348, %s347, 1
        %s350 = smul.addr %s349, 8
        %s351 = scalar_lea.vmem %s1, %s350
        %p352 = pneg %p100
        %p353 = pneg %p97
        %p354 = pneg %p121
        %p355 = pneg %p118
        %p356 = pneg %p142
        %p357 = pneg %p139
        %p358 = pneg %p168
        %p359 = pneg %p165
        %s360 = sand.u32 %s155, 1
        %s361 = scalar_lea.sflag [#allocation3], %s360
        %s362 = sand.u32 %s155, 1
        %s363 = smul.addr %s362, 8
        %s364 = scalar_lea.vmem [#allocation2], %s363
        %p365 = pneg %p194
        %p366 = pneg %p191
        %s367 = sand.u32 %s29, 1
        %s368 = scalar_lea.sflag [#allocation5], %s367
        %s369 = sand.u32 %s181, 1
        %s370 = smul.addr %s369, 8
        %s371 = scalar_lea.vmem [#allocation4], %s370
        %p372 = pneg %p220
        %p373 = pneg %p217
        %s374 = sand.u32 %s29, 1
        %s375 = scalar_lea.sflag [#allocation5], %s374
        %s376 = sand.u32 %s207, 1
        %s377 = smul.addr %s376, 8
        %s378 = scalar_lea.vmem [#allocation6], %s377
        %p379 = pneg %p246
        %p380 = pneg %p243
        %s381 = sand.u32 %s29, 1
        %s382 = scalar_lea.sflag [#allocation8], %s381
        %s383 = sand.u32 %s233, 1
        %s384 = scalar_lea.vmem [#allocation7], %s383
        %p385 = pneg %p272
        %p386 = pneg %p269
        %s387 = sand.u32 %s29, 1
        %s388 = scalar_lea.sflag [#allocation8], %s387
        %s389 = sand.u32 %s259, 1
        %s390 = scalar_lea.vmem [#allocation9], %s389
        %s391 = sadd.s32 %s33, %s34
        %p392 = scmp.lt.s32.totalorder %s391, 0
        %s393 = scalar_select %p392, %s391, 0
        %s394 = smul.u32 2, %s393
        %p395 = scmp.lt.s32.totalorder %s394, 1
        %s396 = scalar_select %p395, %s394, 1
        %s397 = smul.addr %s396, 8
        %s398 = scalar_lea.vmem %s0, %s397
        %s399 = sadd.s32 %s33, %s34
        %p400 = scmp.lt.s32.totalorder %s399, 0
        %s401 = scalar_select %p400, %s399, 0
        %s402 = smul.u32 2, %s401
        %s403 = sadd.s32 %s33, %s34
        %p404 = scmp.lt.s32.totalorder %s403, 0
        %s405 = scalar_select %p404, %s403, 0
        %s406 = smul.u32 2, %s405
        %p407 = scmp.lt.s32.totalorder %s406, 1
        %s408 = scalar_select %p407, %s406, 1
        %s409 = smul.addr %s408, 8
        %s410 = scalar_lea.vmem %s1, %s409
        %s411 = sadd.s32 %s33, %s34
        %p412 = scmp.lt.s32.totalorder %s411, 0
        %s413 = scalar_select %p412, %s411, 0
        %s414 = smul.u32 2, %s413
        %p415 = scmp.eq.s32.totalorder %s34, 0
        // Predicated region
        $region37: #{tpu_custom_call.1} parent=35 // pred_check
          %p416 = pneg %p415
        $region38: #{tpu_custom_call.1} parent=35 // pred_check_branch
          %418 = sbr.rel (%p416) target = $region40
        $region39: #{tpu_custom_call.1} parent=35 // pred_region
          %vm419 = vcmask 64512
          %420 = vst.msk [vmem:[%s364] sm:$0xff] %vm419, 0.0
          %421 = vst.msk [vmem:[%s371] sm:$0xff] %vm419, 0.0
          %422 = vst.msk [vmem:[%s378] sm:$0xff] %vm419, 0.0
          %vm423 = vcmask 57344
          %424 = vst.msk [vmem:[%s384] sm:$0x1] %vm423, 0.0
          %425 = vst.msk [vmem:[%s390] sm:$0x1] %vm423, 0.0
        $region40: #{tpu_custom_call.1} parent=35 // pred_fallthru
          _
        %s426 = sadd.s32 %s33, %s34
        %s427 = smul.u32 %s426, 16
        %s428 = ssub.s32 16, %s427
        %v429 = vlaneseq
        %v430 = vshrl.u32 %v429, 7
        %v431 = vadd.s32 %v430, 8
        %v432 = vstv %s428
        %vm433 = vcmp.lt.s32.totalorder %v430, %v432
        %vm434 = vcmp.lt.s32.totalorder %v431, %v432
        %v435 = vld [vmem:[%s398] sm:$0xff]
        %v436 = vld [vmem:[%s398 + $0x8] sm:$0xff]
        %v437 = vld [vmem:[%s2] sm:$0x1]
        %v439 = vlaneseq
        %v440 = vshrl.u32 %v439, 7
        %v441 = vsub.s32 0, %v440
        %v442 = vrot.slane %v437, %v441
        %v444 = vsub.f32 %v435, %v442
        %v445 = vsub.f32 %v436, %v442
        %v446 = vld [vmem:[%s410] sm:$0xff]
        %v447 = vld [vmem:[%s410 + $0x8] sm:$0xff]
        %v448 = vld [vmem:[%s3] sm:$0x1]
        %v450 = vlaneseq
        %v451 = vshrl.u32 %v450, 7
        %v452 = vsub.s32 0, %v451
        %v453 = vrot.slane %v448, %v452
        %v455 = vsub.f32 %v446, %v453
        %v456 = vsub.f32 %v447, %v453
        %v457 = vsel %vm433, 1, 0
        %v458 = vsel %vm434, 1, 0
        %vm459 = vcmp.eq.s32.totalorder %v457, 1
        %vm460 = vcmp.eq.s32.totalorder %v458, 1
        %v461 = vsel %vm459, %v444, 0.0
        %v462 = vsel %vm460, %v445, 0.0
        %v463 = vsel %vm459, %v455, 0.0
        %v464 = vsel %vm460, %v456, 0.0
        %v465 = vld [vmem:[%s364] sm:$0xff]
        %466 = vxpose.xlu0.b32.start [1/16] %v461, 128
        %467 = vxpose.xlu0.b32.cont [2/16] %v462, 128
        %468 = vxpose.xlu0.b32.cont [3/16] 0.0, 128
        %469 = vxpose.xlu0.b32.cont [4/16] 0.0, 128
        %470 = vxpose.xlu0.b32.cont [5/16] 0.0, 128
        %471 = vxpose.xlu0.b32.cont [6/16] 0.0, 128
        %472 = vxpose.xlu0.b32.cont [7/16] 0.0, 128
        %473 = vxpose.xlu0.b32.cont [8/16] 0.0, 128
        %474 = vxpose.xlu0.b32.cont [9/16] 0.0, 128
        %475 = vxpose.xlu0.b32.cont [10/16] 0.0, 128
        %476 = vxpose.xlu0.b32.cont [11/16] 0.0, 128
        %477 = vxpose.xlu0.b32.cont [12/16] 0.0, 128
        %478 = vxpose.xlu0.b32.cont [13/16] 0.0, 128
        %479 = vxpose.xlu0.b32.cont [14/16] 0.0, 128
        %480 = vxpose.xlu0.b32.cont [15/16] 0.0, 128
        %481 = vxpose.xlu0.b32.end [16/16] 0.0, 128
        %v482 = vpop.trf.xlu0
        %v483 = vpop.trf.xlu0
        %v484 = vpop.trf.xlu0
        %v485 = vpop.trf.xlu0
        %v486 = vpop.trf.xlu0
        %v487 = vpop.trf.xlu0
        %v488 = vpop.trf.xlu0
        %v489 = vpop.trf.xlu0
        %v490 = vpop.trf.xlu0
        %v491 = vpop.trf.xlu0
        %v492 = vpop.trf.xlu0
        %v493 = vpop.trf.xlu0
        %v494 = vpop.trf.xlu0
        %v495 = vpop.trf.xlu0
        %v496 = vpop.trf.xlu0
        %v497 = vpop.trf.xlu0
        %vm498 = vcmask 130048
        %v500 = vsel %vm498, %v482, 0
        %502 = vmatprep.subr.mxu0 0.0
        %503 = vmatpush1.msra.mxu0 0.0
        %504 = vmatprep.subr.mxu0 0.0
        %505 = vmatpush1.msra.mxu0 0.0
        %506 = vmatprep.subr.mxu0 0.0
        %507 = vmatpush1.msra.mxu0 0.0
        %508 = vmatprep.subr.mxu0 0.0
        %509 = vmatpush1.msra.mxu0 0.0
        %510 = vmatprep.subr.mxu0 0.0
        %511 = vmatpush1.msra.mxu0 0.0
        %512 = vmatprep.subr.mxu0 0.0
        %513 = vmatpush1.msra.mxu0 0.0
        %514 = vmatprep.subr.mxu0 0.0
        %515 = vmatpush1.msra.mxu0 0.0
        %516 = vmatprep.subr.mxu0 0.0
        %517 = vmatpush1.msra.mxu0 0.0
        %518 = vmatprep.subr.mxu0 0.0
        %519 = vmatpush1.msra.mxu0 0.0
        %520 = vmatprep.subr.mxu0 0.0
        %521 = vmatpush1.msra.mxu0 0.0
        %522 = vmatprep.subr.mxu0 0.0
        %523 = vmatpush1.msra.mxu0 0.0
        %524 = vmatprep.subr.mxu0 0.0
        %525 = vmatpush1.msra.mxu0 0.0
        %526 = vmatprep.subr.mxu0 0.0
        %527 = vmatpush1.msra.mxu0 0.0
        %528 = vmatprep.subr.mxu0 0.0
        %529 = vmatpush1.msra.mxu0 0.0
        %530 = vmatprep.subr.mxu0 0.0
        %531 = vmatpush1.msra.mxu0 %v462
        %532 = vmatprep.subr.mxu0 0.0
        %533 = vmatpush1.msra.mxu0 %v461
        %534 = vmatprep.subr.mxu0 0.0
        %535 = vmatpush2.msra.mxu0 0.0
        %536 = vmatprep.subr.mxu0 0.0
        %537 = vmatpush2.msra.mxu0 0.0
        %538 = vmatprep.subr.mxu0 0.0
        %539 = vmatpush2.msra.mxu0 0.0
        %540 = vmatprep.subr.mxu0 0.0
        %541 = vmatpush2.msra.mxu0 0.0
        %542 = vmatprep.subr.mxu0 0.0
        %543 = vmatpush2.msra.mxu0 0.0
        %544 = vmatprep.subr.mxu0 0.0
        %545 = vmatpush2.msra.mxu0 0.0
        %546 = vmatprep.subr.mxu0 0.0
        %547 = vmatpush2.msra.mxu0 0.0
        %548 = vmatprep.subr.mxu0 0.0
        %549 = vmatpush2.msra.mxu0 0.0
        %550 = vmatprep.subr.mxu0 0.0
        %551 = vmatpush2.msra.mxu0 0.0
        %552 = vmatprep.subr.mxu0 0.0
        %553 = vmatpush2.msra.mxu0 0.0
        %554 = vmatprep.subr.mxu0 0.0
        %555 = vmatpush2.msra.mxu0 0.0
        %556 = vmatprep.subr.mxu0 0.0
        %557 = vmatpush2.msra.mxu0 0.0
        %558 = vmatprep.subr.mxu0 0.0
        %559 = vmatpush2.msra.mxu0 0.0
        %560 = vmatprep.subr.mxu0 0.0
        %561 = vmatpush2.msra.mxu0 0.0
        %562 = vmatprep.subr.mxu0 0.0
        %563 = vmatpush2.msra.mxu0 0.0
        %564 = vmatprep.subr.mxu0 0.0
        %565 = vmatpush2.msra.mxu0 0.0
        %566 = vmatprep.mubr.f32.mxu0 0.0
        %567 = vmatmul.mubr.f32.gmra.mxu0 %v500
        %v568 = vpop.f32.mrf.mxu0
        %v569 = vadd.f32 0.0, %v568
        %v570 = vpop.f32.mrf.mxu0
        %571 = vdwg.mxu0
        %v572 = vadd.f32 %v465, %v569
        %vm573 = vcmask 64512
        %574 = vst.msk [vmem:[%s364] sm:$0xff] %vm573, %v572
        %v575 = vld [vmem:[%s371] sm:$0xff]
        %576 = vmatprep.subr.mxu0 0.0
        %577 = vmatpush1.msra.mxu0 0.0
        %578 = vmatprep.subr.mxu0 0.0
        %579 = vmatpush1.msra.mxu0 0.0
        %580 = vmatprep.subr.mxu0 0.0
        %581 = vmatpush1.msra.mxu0 0.0
        %582 = vmatprep.subr.mxu0 0.0
        %583 = vmatpush1.msra.mxu0 0.0
        %584 = vmatprep.subr.mxu0 0.0
        %585 = vmatpush1.msra.mxu0 0.0
        %586 = vmatprep.subr.mxu0 0.0
        %587 = vmatpush1.msra.mxu0 0.0
        %588 = vmatprep.subr.mxu0 0.0
        %589 = vmatpush1.msra.mxu0 0.0
        %590 = vmatprep.subr.mxu0 0.0
        %591 = vmatpush1.msra.mxu0 0.0
        %592 = vmatprep.subr.mxu0 0.0
        %593 = vmatpush1.msra.mxu0 0.0
        %594 = vmatprep.subr.mxu0 0.0
        %595 = vmatpush1.msra.mxu0 0.0
        %596 = vmatprep.subr.mxu0 0.0
        %597 = vmatpush1.msra.mxu0 0.0
        %598 = vmatprep.subr.mxu0 0.0
        %599 = vmatpush1.msra.mxu0 0.0
        %600 = vmatprep.subr.mxu0 0.0
        %601 = vmatpush1.msra.mxu0 0.0
        %602 = vmatprep.subr.mxu0 0.0
        %603 = vmatpush1.msra.mxu0 0.0
        %604 = vmatprep.subr.mxu0 0.0
        %605 = vmatpush1.msra.mxu0 %v464
        %606 = vmatprep.subr.mxu0 0.0
        %607 = vmatpush1.msra.mxu0 %v463
        %608 = vmatprep.subr.mxu0 0.0
        %609 = vmatpush2.msra.mxu0 0.0
        %610 = vmatprep.subr.mxu0 0.0
        %611 = vmatpush2.msra.mxu0 0.0
        %612 = vmatprep.subr.mxu0 0.0
        %613 = vmatpush2.msra.mxu0 0.0
        %614 = vmatprep.subr.mxu0 0.0
        %615 = vmatpush2.msra.mxu0 0.0
        %616 = vmatprep.subr.mxu0 0.0
        %617 = vmatpush2.msra.mxu0 0.0
        %618 = vmatprep.subr.mxu0 0.0
        %619 = vmatpush2.msra.mxu0 0.0
        %620 = vmatprep.subr.mxu0 0.0
        %621 = vmatpush2.msra.mxu0 0.0
        %622 = vmatprep.subr.mxu0 0.0
        %623 = vmatpush2.msra.mxu0 0.0
        %624 = vmatprep.subr.mxu0 0.0
        %625 = vmatpush2.msra.mxu0 0.0
        %626 = vmatprep.subr.mxu0 0.0
        %627 = vmatpush2.msra.mxu0 0.0
        %628 = vmatprep.subr.mxu0 0.0
        %629 = vmatpush2.msra.mxu0 0.0
        %630 = vmatprep.subr.mxu0 0.0
        %631 = vmatpush2.msra.mxu0 0.0
        %632 = vmatprep.subr.mxu0 0.0
        %633 = vmatpush2.msra.mxu0 0.0
        %634 = vmatprep.subr.mxu0 0.0
        %635 = vmatpush2.msra.mxu0 0.0
        %636 = vmatprep.subr.mxu0 0.0
        %637 = vmatpush2.msra.mxu0 0.0
        %638 = vmatprep.subr.mxu0 0.0
        %639 = vmatpush2.msra.mxu0 0.0
        %640 = vmatprep.mubr.f32.mxu0 0.0
        %641 = vmatmul.mubr.f32.gmra.mxu0 %v500
        %v642 = vpop.f32.mrf.mxu0
        %v643 = vadd.f32 0.0, %v642
        %v644 = vpop.f32.mrf.mxu0
        %645 = vdwg.mxu0
        %v646 = vadd.f32 %v575, %v643
        %647 = vst.msk [vmem:[%s371] sm:$0xff] %vm573, %v646
        %v648 = vld [vmem:[%s378] sm:$0xff]
        %649 = vxpose.xlu0.b32.start [1/16] %v463, 128
        %650 = vxpose.xlu0.b32.cont [2/16] %v464, 128
        %651 = vxpose.xlu0.b32.cont [3/16] 0.0, 128
        %652 = vxpose.xlu0.b32.cont [4/16] 0.0, 128
        %653 = vxpose.xlu0.b32.cont [5/16] 0.0, 128
        %654 = vxpose.xlu0.b32.cont [6/16] 0.0, 128
        %655 = vxpose.xlu0.b32.cont [7/16] 0.0, 128
        %656 = vxpose.xlu0.b32.cont [8/16] 0.0, 128
        %657 = vxpose.xlu0.b32.cont [9/16] 0.0, 128
        %658 = vxpose.xlu0.b32.cont [10/16] 0.0, 128
        %659 = vxpose.xlu0.b32.cont [11/16] 0.0, 128
        %660 = vxpose.xlu0.b32.cont [12/16] 0.0, 128
        %661 = vxpose.xlu0.b32.cont [13/16] 0.0, 128
        %662 = vxpose.xlu0.b32.cont [14/16] 0.0, 128
        %663 = vxpose.xlu0.b32.cont [15/16] 0.0, 128
        %664 = vxpose.xlu0.b32.end [16/16] 0.0, 128
        %v665 = vpop.trf.xlu0
        %v666 = vpop.trf.xlu0
        %v667 = vpop.trf.xlu0
        %v668 = vpop.trf.xlu0
        %v669 = vpop.trf.xlu0
        %v670 = vpop.trf.xlu0
        %v671 = vpop.trf.xlu0
        %v672 = vpop.trf.xlu0
        %v673 = vpop.trf.xlu0
        %v674 = vpop.trf.xlu0
        %v675 = vpop.trf.xlu0
        %v676 = vpop.trf.xlu0
        %v677 = vpop.trf.xlu0
        %v678 = vpop.trf.xlu0
        %v679 = vpop.trf.xlu0
        %v680 = vpop.trf.xlu0
        %v682 = vsel %vm498, %v665, 0
        %684 = vmatprep.subr.mxu0 0.0
        %685 = vmatpush1.msra.mxu0 0.0
        %686 = vmatprep.subr.mxu0 0.0
        %687 = vmatpush1.msra.mxu0 0.0
        %688 = vmatprep.subr.mxu0 0.0
        %689 = vmatpush1.msra.mxu0 0.0
        %690 = vmatprep.subr.mxu0 0.0
        %691 = vmatpush1.msra.mxu0 0.0
        %692 = vmatprep.subr.mxu0 0.0
        %693 = vmatpush1.msra.mxu0 0.0
        %694 = vmatprep.subr.mxu0 0.0
        %695 = vmatpush1.msra.mxu0 0.0
        %696 = vmatprep.subr.mxu0 0.0
        %697 = vmatpush1.msra.mxu0 0.0
        %698 = vmatprep.subr.mxu0 0.0
        %699 = vmatpush1.msra.mxu0 0.0
        %700 = vmatprep.subr.mxu0 0.0
        %701 = vmatpush1.msra.mxu0 0.0
        %702 = vmatprep.subr.mxu0 0.0
        %703 = vmatpush1.msra.mxu0 0.0
        %704 = vmatprep.subr.mxu0 0.0
        %705 = vmatpush1.msra.mxu0 0.0
        %706 = vmatprep.subr.mxu0 0.0
        %707 = vmatpush1.msra.mxu0 0.0
        %708 = vmatprep.subr.mxu0 0.0
        %709 = vmatpush1.msra.mxu0 0.0
        %710 = vmatprep.subr.mxu0 0.0
        %711 = vmatpush1.msra.mxu0 0.0
        %712 = vmatprep.subr.mxu0 0.0
        %713 = vmatpush1.msra.mxu0 %v464
        %714 = vmatprep.subr.mxu0 0.0
        %715 = vmatpush1.msra.mxu0 %v463
        %716 = vmatprep.subr.mxu0 0.0
        %717 = vmatpush2.msra.mxu0 0.0
        %718 = vmatprep.subr.mxu0 0.0
        %719 = vmatpush2.msra.mxu0 0.0
        %720 = vmatprep.subr.mxu0 0.0
        %721 = vmatpush2.msra.mxu0 0.0
        %722 = vmatprep.subr.mxu0 0.0
        %723 = vmatpush2.msra.mxu0 0.0
        %724 = vmatprep.subr.mxu0 0.0
        %725 = vmatpush2.msra.mxu0 0.0
        %726 = vmatprep.subr.mxu0 0.0
        %727 = vmatpush2.msra.mxu0 0.0
        %728 = vmatprep.subr.mxu0 0.0
        %729 = vmatpush2.msra.mxu0 0.0
        %730 = vmatprep.subr.mxu0 0.0
        %731 = vmatpush2.msra.mxu0 0.0
        %732 = vmatprep.subr.mxu0 0.0
        %733 = vmatpush2.msra.mxu0 0.0
        %734 = vmatprep.subr.mxu0 0.0
        %735 = vmatpush2.msra.mxu0 0.0
        %736 = vmatprep.subr.mxu0 0.0
        %737 = vmatpush2.msra.mxu0 0.0
        %738 = vmatprep.subr.mxu0 0.0
        %739 = vmatpush2.msra.mxu0 0.0
        %740 = vmatprep.subr.mxu0 0.0
        %741 = vmatpush2.msra.mxu0 0.0
        %742 = vmatprep.subr.mxu0 0.0
        %743 = vmatpush2.msra.mxu0 0.0
        %744 = vmatprep.subr.mxu0 0.0
        %745 = vmatpush2.msra.mxu0 0.0
        %746 = vmatprep.subr.mxu0 0.0
        %747 = vmatpush2.msra.mxu0 0.0
        %748 = vmatprep.mubr.f32.mxu0 0.0
        %749 = vmatmul.mubr.f32.gmra.mxu0 %v682
        %v750 = vpop.f32.mrf.mxu0
        %v751 = vadd.f32 0.0, %v750
        %v752 = vpop.f32.mrf.mxu0
        %753 = vdwg.mxu0
        %v754 = vadd.f32 %v648, %v751
        %755 = vst.msk [vmem:[%s378] sm:$0xff] %vm573, %v754
        %v756 = vld [vmem:[%s384] sm:$0x1]
        %v758 = vsel %vm498, 1.0, 0
        %760 = vmatprep.subr.mxu0 0.0
        %761 = vmatpush1.msra.mxu0 0.0
        %762 = vmatprep.subr.mxu0 0.0
        %763 = vmatpush1.msra.mxu0 0.0
        %764 = vmatprep.subr.mxu0 0.0
        %765 = vmatpush1.msra.mxu0 0.0
        %766 = vmatprep.subr.mxu0 0.0
        %767 = vmatpush1.msra.mxu0 0.0
        %768 = vmatprep.subr.mxu0 0.0
        %769 = vmatpush1.msra.mxu0 0.0
        %770 = vmatprep.subr.mxu0 0.0
        %771 = vmatpush1.msra.mxu0 0.0
        %772 = vmatprep.subr.mxu0 0.0
        %773 = vmatpush1.msra.mxu0 0.0
        %774 = vmatprep.subr.mxu0 0.0
        %775 = vmatpush1.msra.mxu0 0.0
        %776 = vmatprep.subr.mxu0 0.0
        %777 = vmatpush1.msra.mxu0 0.0
        %778 = vmatprep.subr.mxu0 0.0
        %779 = vmatpush1.msra.mxu0 0.0
        %780 = vmatprep.subr.mxu0 0.0
        %781 = vmatpush1.msra.mxu0 0.0
        %782 = vmatprep.subr.mxu0 0.0
        %783 = vmatpush1.msra.mxu0 0.0
        %784 = vmatprep.subr.mxu0 0.0
        %785 = vmatpush1.msra.mxu0 0.0
        %786 = vmatprep.subr.mxu0 0.0
        %787 = vmatpush1.msra.mxu0 0.0
        %788 = vmatprep.subr.mxu0 0.0
        %789 = vmatpush1.msra.mxu0 %v462
        %790 = vmatprep.subr.mxu0 0.0
        %791 = vmatpush1.msra.mxu0 %v461
        %792 = vmatprep.subr.mxu0 0.0
        %793 = vmatpush2.msra.mxu0 0.0
        %794 = vmatprep.subr.mxu0 0.0
        %795 = vmatpush2.msra.mxu0 0.0
        %796 = vmatprep.subr.mxu0 0.0
        %797 = vmatpush2.msra.mxu0 0.0
        %798 = vmatprep.subr.mxu0 0.0
        %799 = vmatpush2.msra.mxu0 0.0
        %800 = vmatprep.subr.mxu0 0.0
        %801 = vmatpush2.msra.mxu0 0.0
        %802 = vmatprep.subr.mxu0 0.0
        %803 = vmatpush2.msra.mxu0 0.0
        %804 = vmatprep.subr.mxu0 0.0
        %805 = vmatpush2.msra.mxu0 0.0
        %806 = vmatprep.subr.mxu0 0.0
        %807 = vmatpush2.msra.mxu0 0.0
        %808 = vmatprep.subr.mxu0 0.0
        %809 = vmatpush2.msra.mxu0 0.0
        %810 = vmatprep.subr.mxu0 0.0
        %811 = vmatpush2.msra.mxu0 0.0
        %812 = vmatprep.subr.mxu0 0.0
        %813 = vmatpush2.msra.mxu0 0.0
        %814 = vmatprep.subr.mxu0 0.0
        %815 = vmatpush2.msra.mxu0 0.0
        %816 = vmatprep.subr.mxu0 0.0
        %817 = vmatpush2.msra.mxu0 0.0
        %818 = vmatprep.subr.mxu0 0.0
        %819 = vmatpush2.msra.mxu0 0.0
        %820 = vmatprep.subr.mxu0 0.0
        %821 = vmatpush2.msra.mxu0 0.0
        %822 = vmatprep.subr.mxu0 0.0
        %823 = vmatpush2.msra.mxu0 0.0
        %824 = vmatprep.mubr.f32.mxu0 0.0
        %825 = vmatmul.mubr.f32.gmra.mxu0 %v758
        %v826 = vpop.f32.mrf.mxu0
        %v827 = vadd.f32 0.0, %v826
        %v828 = vpop.f32.mrf.mxu0
        %829 = vdwg.mxu0
        %v830 = vadd.f32 %v756, %v827
        %vm831 = vcmask 57344
        %832 = vst.msk [vmem:[%s384] sm:$0x1] %vm831, %v830
        %v833 = vld [vmem:[%s390] sm:$0x1]
        %834 = vmatprep.subr.mxu0 0.0
        %835 = vmatpush1.msra.mxu0 0.0
        %836 = vmatprep.subr.mxu0 0.0
        %837 = vmatpush1.msra.mxu0 0.0
        %838 = vmatprep.subr.mxu0 0.0
        %839 = vmatpush1.msra.mxu0 0.0
        %840 = vmatprep.subr.mxu0 0.0
        %841 = vmatpush1.msra.mxu0 0.0
        %842 = vmatprep.subr.mxu0 0.0
        %843 = vmatpush1.msra.mxu0 0.0
        %844 = vmatprep.subr.mxu0 0.0
        %845 = vmatpush1.msra.mxu0 0.0
        %846 = vmatprep.subr.mxu0 0.0
        %847 = vmatpush1.msra.mxu0 0.0
        %848 = vmatprep.subr.mxu0 0.0
        %849 = vmatpush1.msra.mxu0 0.0
        %850 = vmatprep.subr.mxu0 0.0
        %851 = vmatpush1.msra.mxu0 0.0
        %852 = vmatprep.subr.mxu0 0.0
        %853 = vmatpush1.msra.mxu0 0.0
        %854 = vmatprep.subr.mxu0 0.0
        %855 = vmatpush1.msra.mxu0 0.0
        %856 = vmatprep.subr.mxu0 0.0
        %857 = vmatpush1.msra.mxu0 0.0
        %858 = vmatprep.subr.mxu0 0.0
        %859 = vmatpush1.msra.mxu0 0.0
        %860 = vmatprep.subr.mxu0 0.0
        %861 = vmatpush1.msra.mxu0 0.0
        %862 = vmatprep.subr.mxu0 0.0
        %863 = vmatpush1.msra.mxu0 %v464
        %864 = vmatprep.subr.mxu0 0.0
        %865 = vmatpush1.msra.mxu0 %v463
        %866 = vmatprep.subr.mxu0 0.0
        %867 = vmatpush2.msra.mxu0 0.0
        %868 = vmatprep.subr.mxu0 0.0
        %869 = vmatpush2.msra.mxu0 0.0
        %870 = vmatprep.subr.mxu0 0.0
        %871 = vmatpush2.msra.mxu0 0.0
        %872 = vmatprep.subr.mxu0 0.0
        %873 = vmatpush2.msra.mxu0 0.0
        %874 = vmatprep.subr.mxu0 0.0
        %875 = vmatpush2.msra.mxu0 0.0
        %876 = vmatprep.subr.mxu0 0.0
        %877 = vmatpush2.msra.mxu0 0.0
        %878 = vmatprep.subr.mxu0 0.0
        %879 = vmatpush2.msra.mxu0 0.0
        %880 = vmatprep.subr.mxu0 0.0
        %881 = vmatpush2.msra.mxu0 0.0
        %882 = vmatprep.subr.mxu0 0.0
        %883 = vmatpush2.msra.mxu0 0.0
        %884 = vmatprep.subr.mxu0 0.0
        %885 = vmatpush2.msra.mxu0 0.0
        %886 = vmatprep.subr.mxu0 0.0
        %887 = vmatpush2.msra.mxu0 0.0
        %888 = vmatprep.subr.mxu0 0.0
        %889 = vmatpush2.msra.mxu0 0.0
        %890 = vmatprep.subr.mxu0 0.0
        %891 = vmatpush2.msra.mxu0 0.0
        %892 = vmatprep.subr.mxu0 0.0
        %893 = vmatpush2.msra.mxu0 0.0
        %894 = vmatprep.subr.mxu0 0.0
        %895 = vmatpush2.msra.mxu0 0.0
        %896 = vmatprep.subr.mxu0 0.0
        %897 = vmatpush2.msra.mxu0 0.0
        %898 = vmatprep.mubr.f32.mxu0 0.0
        %899 = vmatmul.mubr.f32.gmra.mxu0 %v758
        %v900 = vpop.f32.mrf.mxu0
        %v901 = vadd.f32 0.0, %v900
        %v902 = vpop.f32.mrf.mxu0
        %903 = vdwg.mxu0
        %v904 = vadd.f32 %v833, %v901
        %905 = vst.msk [vmem:[%s390] sm:$0x1] %vm831, %v904
        %s906 = sand.u32 %s155, 1
        %s907 = scalar_lea.sflag [#allocation3], %s906
        %s908 = sand.u32 %s155, 1
        %s909 = smul.addr %s908, 8
        %s910 = scalar_lea.vmem [#allocation2], %s909
        %s911 = sand.u32 %s29, 1
        %s912 = scalar_lea.sflag [#allocation5], %s911
        %s913 = sand.u32 %s181, 1
        %s914 = smul.addr %s913, 8
        %s915 = scalar_lea.vmem [#allocation4], %s914
        %s916 = sand.u32 %s29, 1
        %s917 = scalar_lea.sflag [#allocation5], %s916
        %s918 = sand.u32 %s207, 1
        %s919 = smul.addr %s918, 8
        %s920 = scalar_lea.vmem [#allocation6], %s919
        %s921 = sand.u32 %s29, 1
        %s922 = scalar_lea.sflag [#allocation8], %s921
        %s923 = sand.u32 %s233, 1
        %s924 = scalar_lea.vmem [#allocation7], %s923
        %s925 = sand.u32 %s29, 1
        %s926 = scalar_lea.sflag [#allocation8], %s925
        %s927 = sand.u32 %s259, 1
        %s928 = scalar_lea.vmem [#allocation9], %s927
        // Predicated region
        $region41: #{tpu_custom_call.1} parent=35 // pred_check
          %p929 = pneg %p165
        $region42: #{tpu_custom_call.1} parent=35 // pred_check_branch
          %931 = sbr.rel (%p929) target = $region44
        $region43: #{tpu_custom_call.1} parent=35 // pred_region
          %s933 = ssub.s32 128, 128
          %934 = vsyncadd %s907, %s933
          %s935 = smul.addr %s33, 128
          %s936 = scalar_lea.hbm %s4, %s935
          %s938 = sshll.u32 %s910, 4
          %s939 = int_to_ptr.vmem [resolvable:$true] %s938
          %941 = dma.vmem_to_hbm [thread:$0]  %s939, 128, %s936, %s907
        $region44: #{tpu_custom_call.1} parent=35 // pred_fallthru
          _
        // Predicated region
        $region45: #{tpu_custom_call.1} parent=35 // pred_check
          %p942 = pneg %p191
        $region46: #{tpu_custom_call.1} parent=35 // pred_check_branch
          %944 = sbr.rel (%p942) target = $region48
        $region47: #{tpu_custom_call.1} parent=35 // pred_region
          %s946 = ssub.s32 128, 128
          %947 = vsyncadd %s912, %s946
          %s948 = smul.addr %s33, 128
          %s949 = scalar_lea.hbm %s5, %s948
          %s951 = sshll.u32 %s915, 4
          %s952 = int_to_ptr.vmem [resolvable:$true] %s951
          %954 = dma.vmem_to_hbm [thread:$0]  %s952, 128, %s949, %s912
        $region48: #{tpu_custom_call.1} parent=35 // pred_fallthru
          _
        // Predicated region
        $region49: #{tpu_custom_call.1} parent=35 // pred_check
          %p955 = pneg %p217
        $region50: #{tpu_custom_call.1} parent=35 // pred_check_branch
          %957 = sbr.rel (%p955) target = $region52
        $region51: #{tpu_custom_call.1} parent=35 // pred_region
          %s959 = ssub.s32 128, 128
          %960 = vsyncadd %s917, %s959
          %s961 = smul.addr %s33, 128
          %s962 = scalar_lea.hbm %s6, %s961
          %s964 = sshll.u32 %s920, 4
          %s965 = int_to_ptr.vmem [resolvable:$true] %s964
          %967 = dma.vmem_to_hbm [thread:$0]  %s965, 128, %s962, %s917
        $region52: #{tpu_custom_call.1} parent=35 // pred_fallthru
          _
        // Predicated region
        $region53: #{tpu_custom_call.1} parent=35 // pred_check
          %p968 = pneg %p243
        $region54: #{tpu_custom_call.1} parent=35 // pred_check_branch
          %970 = sbr.rel (%p968) target = $region56
        $region55: #{tpu_custom_call.1} parent=35 // pred_region
          %s972 = ssub.s32 16, 16
          %973 = vsyncadd %s922, %s972
          %s974 = smul.addr %s33, 16
          %s975 = scalar_lea.hbm %s7, %s974
          %s977 = sshll.u32 %s924, 4
          %s978 = int_to_ptr.vmem [resolvable:$true] %s977
          %980 = dma.vmem_to_hbm [thread:$0]  %s978, 16, %s975, %s922
        $region56: #{tpu_custom_call.1} parent=35 // pred_fallthru
          _
        // Predicated region
        $region57: #{tpu_custom_call.1} parent=35 // pred_check
          %p981 = pneg %p269
        $region58: #{tpu_custom_call.1} parent=35 // pred_check_branch
          %983 = sbr.rel (%p981) target = $region60
        $region59: #{tpu_custom_call.1} parent=35 // pred_region
          %s985 = ssub.s32 16, 16
          %986 = vsyncadd %s926, %s985
          %s987 = smul.addr %s33, 16
          %s988 = scalar_lea.hbm %s8, %s987
          %s990 = sshll.u32 %s928, 4
          %s991 = int_to_ptr.vmem [resolvable:$true] %s990
          %993 = dma.vmem_to_hbm [thread:$0]  %s991, 16, %s988, %s926
        $region60: #{tpu_custom_call.1} parent=35 // pred_fallthru
          _
      $region36: #{tpu_custom_call.1} parent=5 // pred_fallthru
        _
      %p994 = scmp.le.s32.totalorder 2, %s24
      // Predicated region
      $region61: #{tpu_custom_call.1} parent=5 // pred_check
        %p995 = pneg %p994
      $region62: #{tpu_custom_call.1} parent=5 // pred_check_branch
        %997 = sbr.rel (%p995) target = $region64
      $region63: #{tpu_custom_call.1} parent=5 // pred_region
        %s998 = ssub.s32 %s24, 2
        // Predicated region
        $region65: #{tpu_custom_call.1} parent=63 // pred_check
          %p999 = pneg %p171
        $region66: #{tpu_custom_call.1} parent=63 // pred_check_branch
          %1001 = sbr.rel (%p999) target = $region68
        $region67: #{tpu_custom_call.1} parent=63 // pred_region
          %s1002 = sand.u32 %s156, 1
          %s1003 = scalar_lea.sflag [#allocation3], %s1002
          %s1004 = sand.u32 %s156, 1
          %s1005 = smul.addr %s1004, 8
          %s1006 = scalar_lea.vmem [#allocation2], %s1005
          %1007 = dma.done %s1003, 128
        $region68: #{tpu_custom_call.1} parent=63 // pred_fallthru
          _
        // Predicated region
        $region69: #{tpu_custom_call.1} parent=63 // pred_check
          %p1008 = pneg %p197
        $region70: #{tpu_custom_call.1} parent=63 // pred_check_branch
          %1010 = sbr.rel (%p1008) target = $region72
        $region71: #{tpu_custom_call.1} parent=63 // pred_region
          %s1011 = sand.u32 %s30, 1
          %s1012 = scalar_lea.sflag [#allocation5], %s1011
          %s1013 = sand.u32 %s182, 1
          %s1014 = smul.addr %s1013, 8
          %s1015 = scalar_lea.vmem [#allocation4], %s1014
          %1016 = dma.done %s1012, 128
        $region72: #{tpu_custom_call.1} parent=63 // pred_fallthru
          _
        // Predicated region
        $region73: #{tpu_custom_call.1} parent=63 // pred_check
          %p1017 = pneg %p223
        $region74: #{tpu_custom_call.1} parent=63 // pred_check_branch
          %1019 = sbr.rel (%p1017) target = $region76
        $region75: #{tpu_custom_call.1} parent=63 // pred_region
          %s1020 = sand.u32 %s30, 1
          %s1021 = scalar_lea.sflag [#allocation5], %s1020
          %s1022 = sand.u32 %s208, 1
          %s1023 = smul.addr %s1022, 8
          %s1024 = scalar_lea.vmem [#allocation6], %s1023
          %1025 = dma.done %s1021, 128
        $region76: #{tpu_custom_call.1} parent=63 // pred_fallthru
          _
        // Predicated region
        $region77: #{tpu_custom_call.1} parent=63 // pred_check
          %p1026 = pneg %p249
        $region78: #{tpu_custom_call.1} parent=63 // pred_check_branch
          %1028 = sbr.rel (%p1026) target = $region80
        $region79: #{tpu_custom_call.1} parent=63 // pred_region
          %s1029 = sand.u32 %s30, 1
          %s1030 = scalar_lea.sflag [#allocation8], %s1029
          %s1031 = sand.u32 %s234, 1
          %s1032 = scalar_lea.vmem [#allocation7], %s1031
          %1033 = dma.done %s1030, 16
        $region80: #{tpu_custom_call.1} parent=63 // pred_fallthru
          _
        // Predicated region
        $region81: #{tpu_custom_call.1} parent=63 // pred_check
          %p1034 = pneg %p275
        $region82: #{tpu_custom_call.1} parent=63 // pred_check_branch
          %1036 = sbr.rel (%p1034) target = $region84
        $region83: #{tpu_custom_call.1} parent=63 // pred_region
          %s1037 = sand.u32 %s30, 1
          %s1038 = scalar_lea.sflag [#allocation8], %s1037
          %s1039 = sand.u32 %s260, 1
          %s1040 = scalar_lea.vmem [#allocation9], %s1039
          %1041 = dma.done %s1038, 16
        $region84: #{tpu_custom_call.1} parent=63 // pred_fallthru
          _
      $region64: #{tpu_custom_call.1} parent=5 // pred_fallthru
        _
    $region6: #{tpu_custom_call.1} parent=1 // loop_footer
      %s28 = sadd.s32 1, %s24
    $region7: #{tpu_custom_call.1} parent=1 // loop_footer_branch
      %23 = sbr.rel target = $region3
    $region8: #{tpu_custom_call.1} parent=1 // loop_exit
      _
    %1042 = vsyncpa [#allocation3], 1
    %s1043 = scalar_lea.sflag [#allocation3], 1
    %1044 = vsyncpa %s1043, 1
    %1045 = vsyncpa [#allocation5], 1
    %s1046 = scalar_lea.sflag [#allocation5], 1
    %1047 = vsyncpa %s1046, 1
    %1048 = vsyncpa [#allocation8], 1
    %s1049 = scalar_lea.sflag [#allocation8], 1
    %1050 = vsyncpa %s1049, 1

</llo_original>
